<compile_context>
chip_gen: v7x
topology: tpu7x:2x2x1
jax: 0.10.0
libtpu: 0.0.40
codegen_flags: <defaults>
</compile_context>

<pallas_src>
import functools

import jax
import jax.numpy as jnp
from jax.experimental import pallas as pl
from jax.experimental.pallas import tpu as pltpu

LANE = 128
_VMEM_CAP = 48 * 1024 * 1024   # conservative: v7x has 64 MiB VMEM per TensorCore


def _round_up(x, m):
    return ((x + m - 1) // m) * m


def _layout(n_nodes, tm_pref=256, ts_pref=512):
    """Pick (n_pad, TM, TS).

    Pads the node count so the chosen tiles always divide n_pad (no silent
    128-wide fallback), and keeps >=2 dst tiles whenever possible so both v7x
    TensorCores get work on the 'parallel' dst axis.
    """
    n = _round_up(max(n_nodes, 8), LANE)
    if n <= LANE:
        return LANE, LANE, LANE                   # tiny graph: single tile
    if n <= 2 * LANE:
        return 2 * LANE, LANE, 2 * LANE           # 2 dst tiles of 128
    n = _round_up(n, 256)                         # 256-wide tiles always divide
    if n % 512 == 0 or n >= 8 * 512:              # cheap to pad to 512 when big
        n = _round_up(n, 512)
    ts = ts_pref if n % ts_pref == 0 else 256
    tm = tm_pref if (n % tm_pref == 0 and n // tm_pref >= 2) else 128
    return n, tm, ts


# --------------------------------------------------------------------------
# Kernel 1: projection  [h | a_src | a_dst] = x @ W_ext  (single MXU matmul).
# --------------------------------------------------------------------------
def _project_kernel(x_ref, w_ref, h_ref, aux_ref, *, d_pad):
    # x / W are already bf16 (cast fused into the wrapper padding).
    he = jnp.dot(x_ref[...], w_ref[...], preferred_element_type=jnp.float32)
    h_ref[...] = he[:, :d_pad].astype(h_ref.dtype)   # bf16 h (halves h DMA)
    aux_ref[...] = he[:, d_pad:]                     # lane-dense (TM,128); cols 0/1 = a_src/a_dst


# --------------------------------------------------------------------------
# Kernel 2: masked GAT attention, online softmax over streamed source tiles.
# grid = (dst_tiles, src_tiles); src axis is the last ("arbitrary") axis.
# Accumulates directly into the resident out tile (no acc scratch).
# --------------------------------------------------------------------------
def _attention_kernel(adst_ref, asrc_ref, h_ref, adj_ref, bias_ref, out_ref,
                      m_sc, l_sc, *, ts, h_resident):
    k = pl.program_id(1)

    @pl.when(k == 0)
    def _():
        m_sc[...] = jnp.full_like(m_sc, -1e30)
        l_sc[...] = jnp.zeros_like(l_sc)
        out_ref[...] = jnp.zeros_like(out_ref)

    mask = adj_ref[...] > 0                        # single mask derivation (int8)

    # e[i, j] = leaky_relu(a_dst[i] + a_src[j], 0.2); a_src is lane-major (1,TS).
    e = adst_ref[...] + asrc_ref[...]              # (TM,1)+(1,TS) -> (TM,TS)
    e = jnp.where(e > 0, e, 0.2 * e)
    # masked entries must not win the row max; keep f32 stats (-1e30, never bf16)
    e = jnp.where(mask, e, jnp.float32(-1e30))

    m_prev = m_sc[...]
    m_new = jnp.maximum(m_prev, jnp.max(e, axis=-1, keepdims=True))
    scale = jnp.exp(m_prev - m_new)
    # explicit masked-zero (required for tiles whose rows are fully masked)
    p = jnp.where(mask, jnp.exp(e - m_new), 0.0)

    if h_resident:
        start = pl.multiple_of(k * ts, ts)
        h_tile = h_ref[pl.ds(start, ts), :]        # slice the resident h
    else:
        h_tile = h_ref[...]                        # streamed per-tile h

    l_sc[...] = scale * l_sc[...] + jnp.sum(p, axis=-1, keepdims=True)
    out_ref[...] = scale * out_ref[...] + jnp.dot(
        p.astype(jnp.bfloat16), h_tile, preferred_element_type=jnp.float32)
    m_sc[...] = m_new

    @pl.when(k == pl.num_programs(1) - 1)
    def _():
        inv_l = pl.reciprocal(l_sc[...], approx=True)   # EUP slot, ~free
        out_ref[...] = out_ref[...] * inv_l + bias_ref[...]


# --------------------------------------------------------------------------
# Dead-value edge encoder (Linear edge_dim -> node_dim). Kept for completeness
# but NOT launched by default: its output is unused by the module's forward.
# --------------------------------------------------------------------------
def _edge_encoder_kernel(ea_ref, w_ref, b_ref, out_ref):
    out_ref[...] = jnp.dot(
        ea_ref[...], w_ref[...], preferred_element_type=jnp.float32) + b_ref[...]


def edge_encoder(edge_attr, w_e, b_e):
    E, edge_dim = edge_attr.shape
    node_dim = w_e.shape[1]
    de = _round_up(edge_dim, LANE)
    dn = _round_up(node_dim, LANE)
    e_pad = LANE if E <= LANE else _round_up(E, 256)
    te = min(256, e_pad)
    ea = jnp.zeros((e_pad, de), jnp.bfloat16).at[:E, :edge_dim].set(
        edge_attr.astype(jnp.bfloat16))
    w = jnp.zeros((de, dn), jnp.bfloat16).at[:edge_dim, :node_dim].set(
        w_e.astype(jnp.bfloat16))
    b = jnp.zeros((1, dn), jnp.float32).at[0, :node_dim].set(b_e[0])
    out = pl.pallas_call(
        _edge_encoder_kernel,
        out_shape=jax.ShapeDtypeStruct((e_pad, dn), jnp.float32),
        grid_spec=pltpu.PrefetchScalarGridSpec(
            num_scalar_prefetch=0,
            grid=(e_pad // te,),
            in_specs=[pl.BlockSpec((te, de), lambda i: (i, 0)),
                      pl.BlockSpec((de, dn), lambda i: (0, 0)),
                      pl.BlockSpec((1, dn), lambda i: (0, 0))],
            out_specs=pl.BlockSpec((te, dn), lambda i: (i, 0)),
        ),
        compiler_params=pltpu.CompilerParams(
            dimension_semantics=("parallel",),
            vmem_limit_bytes=32 * 1024 * 1024),
    )(ea, w, b)
    return out[:E, :node_dim]


# --------------------------------------------------------------------------
# VMEM budget for the attention kernel (double-buffered inputs/outputs).
# --------------------------------------------------------------------------
def _attention_vmem_bytes(n_pad, d_pad, tm, ts, h_resident):
    h_b = (2 * n_pad * d_pad * 2) if h_resident else (2 * ts * d_pad * 2)  # bf16
    adj_b = 2 * tm * ts * 1                                                # int8
    row_b = 2 * (tm * LANE * 4 + 8 * ts * 4 + 8 * d_pad * 4)  # adst / asrc / bias
    out_b = 2 * tm * d_pad * 4
    scr_b = 2 * tm * LANE * 4                                  # m, l scratch
    return h_b + adj_b + row_b + out_b + scr_b


# --------------------------------------------------------------------------
# GATConv wrapper (padded / tiled pallas_calls)
# --------------------------------------------------------------------------
def gat_conv(x_p, adj_i8, w_ext, bias_p, *, n_pad, d_pad, tm, ts):
    # ---- projection: h (bf16) + lane-dense attention logits (f32) ---------
    h, aux = pl.pallas_call(
        functools.partial(_project_kernel, d_pad=d_pad),
        out_shape=(
            jax.ShapeDtypeStruct((n_pad, d_pad), jnp.bfloat16),
            jax.ShapeDtypeStruct((n_pad, LANE), jnp.float32),
        ),
        grid_spec=pltpu.PrefetchScalarGridSpec(
            num_scalar_prefetch=0,
            grid=(n_pad // tm,),
            in_specs=[
                pl.BlockSpec((tm, d_pad), lambda i: (i, 0)),            # x tile (bf16)
                pl.BlockSpec((d_pad, d_pad + LANE), lambda i: (0, 0)),  # W_ext resident
            ],
            out_specs=[
                pl.BlockSpec((tm, d_pad), lambda i: (i, 0)),
                pl.BlockSpec((tm, LANE), lambda i: (i, 0)),
            ],
        ),
        compiler_params=pltpu.CompilerParams(
            dimension_semantics=("parallel",),
            vmem_limit_bytes=32 * 1024 * 1024),
    )(x_p, w_ext)

    # tiny relayout glue in the wrapper (lane-major source logits, dst column)
    a_src_lane = aux[:, 0].reshape(1, n_pad)
    a_dst_col = aux[:, 1:2]

    # ---- attention: resident h when it fits the (v7x-safe) VMEM budget ----
    h_resident = _attention_vmem_bytes(n_pad, d_pad, tm, ts, True) <= _VMEM_CAP
    vmem_need = _attention_vmem_bytes(n_pad, d_pad, tm, ts, h_resident)
    vmem_limit = min(_VMEM_CAP, _round_up(vmem_need, 1 << 20) + (4 << 20))

    if h_resident:
        h_spec = pl.BlockSpec((n_pad, d_pad), lambda i, k: (0, 0))  # read once
    else:
        # TODO(synk): when h cannot be resident, raise TM (512-1024) to cut the
        # number of h re-reads per dst tile.
        h_spec = pl.BlockSpec((ts, d_pad), lambda i, k: (k, 0))

    out = pl.pallas_call(
        functools.partial(_attention_kernel, ts=ts, h_resident=h_resident),
        out_shape=jax.ShapeDtypeStruct((n_pad, d_pad), jnp.float32),
        grid_spec=pltpu.PrefetchScalarGridSpec(
            num_scalar_prefetch=0,
            grid=(n_pad // tm, n_pad // ts),
            in_specs=[
                pl.BlockSpec((tm, 1), lambda i, k: (i, 0)),       # a_dst column
                pl.BlockSpec((1, ts), lambda i, k: (0, k)),       # a_src (lane-major)
                h_spec,                                           # h (bf16)
                pl.BlockSpec((tm, ts), lambda i, k: (i, k)),      # adjacency (int8)
                pl.BlockSpec((1, d_pad), lambda i, k: (0, 0)),    # bias
            ],
            out_specs=pl.BlockSpec((tm, d_pad), lambda i, k: (i, 0)),
            scratch_shapes=[
                pltpu.VMEM((tm, 1), jnp.float32),      # running max m
                pltpu.VMEM((tm, 1), jnp.float32),      # running denom l
            ],
        ),
        compiler_params=pltpu.CompilerParams(
            dimension_semantics=("parallel", "arbitrary"),
            vmem_limit_bytes=vmem_limit),
    )(a_dst_col, a_src_lane, h, adj_i8, bias_p)
    return out


def log_gnn_layer(x, edge_index, edge_attr, params, *, compute_dead_edge_feat=False):
    """Forward pass of LogGNNLayer (use_gat=True). Returns conv(x, edge_index)."""
    N, node_dim = x.shape
    d_pad = _round_up(node_dim, LANE)
    n_pad, tm, ts = _layout(N)

    # edge_feat is dead in the reference module; dropped by default (perf).
    if compute_dead_edge_feat:
        _ = edge_encoder(edge_attr, params["w_e"], params["b_e"])

    # bf16 cast fused into the padding write (halves x DMA; MXU sees bf16 anyway)
    x_p = jnp.zeros((n_pad, d_pad), jnp.bfloat16).at[:N, :node_dim].set(
        x.astype(jnp.bfloat16))

    # W_ext = [W | W@att_src | W@att_dst | 0...]: folds the attention-logit
    # reductions into the projection matmul (lane-dense MXU output block).
    w = params["w"]
    w_src = w @ params["att_src"]                 # (node_dim, 1)
    w_dst = w @ params["att_dst"]
    w_ext = jnp.zeros((d_pad, d_pad + LANE), jnp.float32)
    w_ext = w_ext.at[:node_dim, :node_dim].set(w)
    w_ext = w_ext.at[:node_dim, d_pad:d_pad + 1].set(w_src)
    w_ext = w_ext.at[:node_dim, d_pad + 1:d_pad + 2].set(w_dst)
    w_ext = w_ext.astype(jnp.bfloat16)

    bias = jnp.zeros((1, d_pad), jnp.float32).at[0, :node_dim].set(params["bias"][0])

    # densify edge_index into an int8 mask adj[dst, src] with self loops on all
    # (incl. padded) nodes so every softmax row has at least one valid entry.
    # TODO(synk): bit-pack the mask (8x less HBM) and/or switch to CSR tiles via
    # scalar prefetch + pl.when tile-skipping for large sparse graphs.
    src, dst = edge_index[0], edge_index[1]
    adj = jnp.zeros((n_pad, n_pad), jnp.int8)
    adj = adj.at[dst, src].set(1)
    diag = jnp.arange(n_pad)
    adj = adj.at[diag, diag].set(1)

    out_p = gat_conv(x_p, adj, w_ext, bias, n_pad=n_pad, d_pad=d_pad, tm=tm, ts=ts)
    return out_p[:N, :node_dim]


# --------------------------------------------------------------------------
# Pure-JAX reference for correctness checking
# --------------------------------------------------------------------------
def _reference(x, edge_index, params):
    N = x.shape[0]
    h = x @ params["w"]
    a_s = h @ params["att_src"]
    a_d = h @ params["att_dst"]
    src, dst = edge_index[0], edge_index[1]
    adj = jnp.zeros((N, N), bool).at[dst, src].set(True)
    adj = adj | jnp.eye(N, dtype=bool)
    e = a_d + a_s.T
    e = jnp.where(e > 0, e, 0.2 * e)
    e = jnp.where(adj, e, -jnp.inf)
    alpha = jax.nn.softmax(e, axis=-1)
    return alpha @ h + params["bias"]


if __name__ == "__main__":
    # small shapes consistent with the module
    N = 8          # number of nodes
    E = 12         # number of edges
    node_dim = 32
    edge_dim = 16

    key = jax.random.PRNGKey(0)
    k = jax.random.split(key, 8)

    x = jax.random.normal(k[0], (N, node_dim), jnp.float32)
    edge_attr = jax.random.normal(k[1], (E, edge_dim), jnp.float32)
    edge_index = jnp.stack([
        jax.random.randint(k[2], (E,), 0, N),   # src
        jax.random.randint(k[3], (E,), 0, N),   # dst
    ]).astype(jnp.int32)

    params = {
        # edge_encoder: nn.Linear(edge_dim, node_dim)   (dead value)
        "w_e": jax.random.normal(k[4], (edge_dim, node_dim), jnp.float32) * 0.1,
        "b_e": jnp.zeros((1, node_dim), jnp.float32),
        # GATConv(node_dim, node_dim), heads=1
        "w": jax.random.normal(k[5], (node_dim, node_dim), jnp.float32) * 0.1,
        "att_src": jax.random.normal(k[6], (node_dim, 1), jnp.float32) * 0.1,
        "att_dst": jax.random.normal(k[7], (node_dim, 1), jnp.float32) * 0.1,
        "bias": jnp.zeros((1, node_dim), jnp.float32),
    }

    out = log_gnn_layer(x, edge_index, edge_attr, params)
    out = jax.block_until_ready(out)
    assert out.shape == (N, node_dim)

    ref = _reference(x, edge_index, params)
    err = float(jnp.max(jnp.abs(out - ref)))
    assert bool(jnp.isfinite(jnp.asarray(err))) and err < 3e-2, f"max abs error {err}"
    print("KERNEL_OK")
</pallas_src>

<mosaic_0001>
module attributes {stable_mosaic.version = 11 : i64} {
  func.func @_project_kernel(%arg0: i32, %arg1: memref<128x128xbf16, #tpu.memory_space<vmem>>, %arg2: memref<128x256xbf16, #tpu.memory_space<vmem>>, %arg3: memref<128x128xbf16, #tpu.memory_space<vmem>>, %arg4: memref<128x128xf32, #tpu.memory_space<vmem>>) attributes {dimension_semantics = [#tpu.dimension_semantics<parallel>], iteration_bounds = array<i64: 1>, scalar_prefetch = 0 : i64, scratch_operands = 0 : i64, tpu.core_type = #tpu.core_type<tc>, window_params = [{transform_indices = @transform_0, window_bounds = array<i64: 128, 128>}, {pipeline_mode = #tpu.pipeline_mode<synchronous>, transform_indices = @transform_1, window_bounds = array<i64: 128, 256>}, {transform_indices = @transform_2, window_bounds = array<i64: 128, 128>}, {transform_indices = @transform_3, window_bounds = array<i64: 128, 128>}]} {
    %c0 = arith.constant 0 : index
    %c0_0 = arith.constant 0 : index
    %0 = vector.load %arg1[%c0, %c0_0] : memref<128x128xbf16, #tpu.memory_space<vmem>>, vector<128x128xbf16>
    %c0_1 = arith.constant 0 : index
    %c0_2 = arith.constant 0 : index
    %1 = vector.load %arg2[%c0_1, %c0_2] : memref<128x256xbf16, #tpu.memory_space<vmem>>, vector<128x256xbf16>
    %cst = arith.constant dense<0.000000e+00> : vector<128x256xf32>
    %2 = tpu.matmul %0, %1, %cst {dimension_numbers = #tpu.dot_dimension_numbers<[1], [0], [0], [1], [0, 0, 1, 1], [], []>} : vector<128x128xbf16>, vector<128x256xbf16>, vector<128x256xf32> -> vector<128x256xf32>
    %3 = vector.extract_strided_slice %2 {offsets = [0, 0], sizes = [128, 128], strides = [1, 1]} : vector<128x256xf32> to vector<128x128xf32>
    %4 = arith.truncf %3 : vector<128x128xf32> to vector<128x128xbf16>
    %c0_3 = arith.constant 0 : index
    %c0_4 = arith.constant 0 : index
    %5 = vector.load %arg3[%c0_3, %c0_4] : memref<128x128xbf16, #tpu.memory_space<vmem>>, vector<128x128xbf16>
    tpu.vector_store %arg3[%c0_3, %c0_4], %4 {strides = array<i32>} : memref<128x128xbf16, #tpu.memory_space<vmem>>, vector<128x128xbf16>,
    %6 = vector.extract_strided_slice %2 {offsets = [0, 128], sizes = [128, 128], strides = [1, 1]} : vector<128x256xf32> to vector<128x128xf32>
    %c0_5 = arith.constant 0 : index
    %c0_6 = arith.constant 0 : index
    %7 = vector.load %arg4[%c0_5, %c0_6] : memref<128x128xf32, #tpu.memory_space<vmem>>, vector<128x128xf32>
    tpu.vector_store %arg4[%c0_5, %c0_6], %6 {strides = array<i32>} : memref<128x128xf32, #tpu.memory_space<vmem>>, vector<128x128xf32>,
    return
  }
  func.func @transform_0(%arg0: i32) -> (i32, i32) {
    %c0_i32 = arith.constant 0 : i32
    %c0_i32_0 = arith.constant 0 : i32
    return %arg0, %c0_i32 : i32, i32
  }
  func.func @transform_1(%arg0: i32) -> (i32, i32) {
    %c0_i32 = arith.constant 0 : i32
    %c0_i32_0 = arith.constant 0 : i32
    %c0_i32_1 = arith.constant 0 : i32
    return %c0_i32, %c0_i32_0 : i32, i32
  }
  func.func @transform_2(%arg0: i32) -> (i32, i32) {
    %c0_i32 = arith.constant 0 : i32
    %c0_i32_0 = arith.constant 0 : i32
    return %arg0, %c0_i32 : i32, i32
  }
  func.func @transform_3(%arg0: i32) -> (i32, i32) {
    %c0_i32 = arith.constant 0 : i32
    %c0_i32_0 = arith.constant 0 : i32
    return %arg0, %c0_i32 : i32, i32
  }
}

</mosaic_0001>

<llo_original>
// kernel: tpu_custom_call.1
$region0: #{tpu_custom_call.1}
  #allocation0 [shape = 'u32[]', space=smem, size = 0x4, offset = 0x4, fixed_abs, tag = 'smem constant byte address 0x4 - core index']
  #allocation1 [shape = 'u32[144,128]{1,0:T(1,128)}', space=vmem, size = 0x12000, scoped, tag = 'internal scratch']
  %s0 = inlined_call_operand.hbm [shape: bf16[128,128], index: 0, kind: input, shape index: {}]
  %s1 = inlined_call_operand.hbm [shape: bf16[128,256], index: 1, kind: input, shape index: {}]
  %s2 = inlined_call_operand.hbm [shape: bf16[128,128], index: 2, kind: output, shape index: {0}]
  %s3 = inlined_call_operand.hbm [shape: f32[128,128], index: 3, kind: output, shape index: {1}]
  %4 = xla_tuple %s2, %s3
  %s5 = sld [smem:[#allocation0]]
  $region34: #{tpu_custom_call.1} parent=0
    _
  %s7 = ssub.s32 1, %s5
  %s8 = scalar_select 0, %s7, %s5
  $region1: #{tpu_custom_call.1} parent=0
    #allocation2 [shape = 'u8[32768]{0}', space=vmem, size = 0x8000, scoped, tag = 'input window, operand 0, single buffered']
    #allocation3 [shape = 's32[1]{0}', space=sflag, size = 0x4, scoped, tag = 'scoped memory for tpu_custom_call.1']
    #allocation4 [shape = 's32[1]{0}', space=sflag, size = 0x4, scoped, tag = 'scoped memory for tpu_custom_call.1']
    #allocation5 [shape = 'u8[65536]{0}', space=vmem, size = 0x10000, scoped, tag = 'input window, operand 1, single buffered']
    #allocation6 [shape = 's32[1]{0}', space=sflag, size = 0x4, scoped, tag = 'scoped memory for tpu_custom_call.1']
    #allocation7 [shape = 'u8[32768]{0}', space=vmem, size = 0x8000, scoped, tag = 'output window, operand 0, single buffered']
    #allocation8 [shape = 'u8[65536]{0}', space=vmem, size = 0x10000, scoped, tag = 'output window, operand 1, single buffered']
    #allocation9 [shape = 's32[1]{0}', space=sflag, size = 0x4, scoped, tag = 'scoped memory for tpu_custom_call.1']
    %9 = vsyncpa [#allocation3], 0
    %10 = vsyncpa [#allocation6], 0
    %11 = vsyncpa [#allocation4], 0
    %12 = vsyncpa [#allocation9], 0
    // Predicated region
    $region2: #{tpu_custom_call.1} parent=1 // pred_check
      _
    $region3: #{tpu_custom_call.1} parent=1 // pred_check_branch
      %14 = sbr.rel (0) target = $region5
    $region4: #{tpu_custom_call.1} parent=1 // pred_region
      %s16 = ssub.s32 1024, 1024
      %17 = vsyncadd [#allocation3], %s16
      %s18 = sshll.u32 [#allocation2], 4
      %s19 = int_to_ptr.vmem [resolvable:$true] %s18
      %24 = dma.hbm_to_vmem [thread:$0]  %s0, 1024, %s19, [#allocation3], 64, 64, 4
    $region5: #{tpu_custom_call.1} parent=1 // pred_fallthru
      _
    // Predicated region
    $region6: #{tpu_custom_call.1} parent=1 // pred_check
      _
    $region7: #{tpu_custom_call.1} parent=1 // pred_check_branch
      %26 = sbr.rel (0) target = $region9
    $region8: #{tpu_custom_call.1} parent=1 // pred_region
      %s28 = ssub.s32 2048, 2048
      %29 = vsyncadd [#allocation6], %s28
      %s30 = sshll.u32 [#allocation5], 4
      %s31 = int_to_ptr.vmem [resolvable:$true] %s30
      %36 = dma.hbm_to_vmem [thread:$0]  %s1, 2048, %s31, [#allocation6], 128, 128, 8
    $region9: #{tpu_custom_call.1} parent=1 // pred_fallthru
      _
    // Predicated region
    $region10: #{tpu_custom_call.1} parent=1 // pred_check
      _
    $region11: #{tpu_custom_call.1} parent=1 // pred_check_branch
      %38 = sbr.rel (0) target = $region13
    $region12: #{tpu_custom_call.1} parent=1 // pred_region
      %39 = dma.done [#allocation3], 1024
    $region13: #{tpu_custom_call.1} parent=1 // pred_fallthru
      _
    // Predicated region
    $region14: #{tpu_custom_call.1} parent=1 // pred_check
      _
    $region15: #{tpu_custom_call.1} parent=1 // pred_check_branch
      %41 = sbr.rel (0) target = $region17
    $region16: #{tpu_custom_call.1} parent=1 // pred_region
      %42 = dma.done [#allocation6], 2048
    $region17: #{tpu_custom_call.1} parent=1 // pred_fallthru
      _
    %v44 = vld [vmem:[#allocation2] sm:$0xf]
    %v45 = vld [vmem:[#allocation2 + $0x4] sm:$0xf]
    %v46 = vld [vmem:[#allocation2 + $0x8] sm:$0xf]
    %v47 = vld [vmem:[#allocation2 + $0xc] sm:$0xf]
    %v48 = vld [vmem:[#allocation2 + $0x10] sm:$0xf]
    %v49 = vld [vmem:[#allocation2 + $0x14] sm:$0xf]
    %v50 = vld [vmem:[#allocation2 + $0x18] sm:$0xf]
    %v51 = vld [vmem:[#allocation2 + $0x1c] sm:$0xf]
    %v52 = vld [vmem:[#allocation2 + $0x20] sm:$0xf]
    %v53 = vld [vmem:[#allocation2 + $0x24] sm:$0xf]
    %v54 = vld [vmem:[#allocation2 + $0x28] sm:$0xf]
    %v55 = vld [vmem:[#allocation2 + $0x2c] sm:$0xf]
    %v56 = vld [vmem:[#allocation2 + $0x30] sm:$0xf]
    %v57 = vld [vmem:[#allocation2 + $0x34] sm:$0xf]
    %v58 = vld [vmem:[#allocation2 + $0x38] sm:$0xf]
    %v59 = vld [vmem:[#allocation2 + $0x3c] sm:$0xf]
    %v60 = vld [vmem:[#allocation5] sm:$0xff]
    %v61 = vld [vmem:[#allocation5 + $0x8] sm:$0xff]
    %v62 = vld [vmem:[#allocation5 + $0x10] sm:$0xff]
    %v63 = vld [vmem:[#allocation5 + $0x18] sm:$0xff]
    %v64 = vld [vmem:[#allocation5 + $0x20] sm:$0xff]
    %v65 = vld [vmem:[#allocation5 + $0x28] sm:$0xff]
    %v66 = vld [vmem:[#allocation5 + $0x30] sm:$0xff]
    %v67 = vld [vmem:[#allocation5 + $0x38] sm:$0xff]
    %v68 = vld [vmem:[#allocation5 + $0x40] sm:$0xff]
    %v69 = vld [vmem:[#allocation5 + $0x48] sm:$0xff]
    %v70 = vld [vmem:[#allocation5 + $0x50] sm:$0xff]
    %v71 = vld [vmem:[#allocation5 + $0x58] sm:$0xff]
    %v72 = vld [vmem:[#allocation5 + $0x60] sm:$0xff]
    %v73 = vld [vmem:[#allocation5 + $0x68] sm:$0xff]
    %v74 = vld [vmem:[#allocation5 + $0x70] sm:$0xff]
    %v75 = vld [vmem:[#allocation5 + $0x78] sm:$0xff]
    %v92 = vunpack.c.l.b16 %v44
    %v93 = vunpack.c.l.b16 %v45
    %v94 = vunpack.c.l.b16 %v46
    %v95 = vunpack.c.l.b16 %v47
    %v96 = vunpack.c.l.b16 %v48
    %v97 = vunpack.c.l.b16 %v49
    %v98 = vunpack.c.l.b16 %v50
    %v99 = vunpack.c.l.b16 %v51
    %v100 = vunpack.c.l.b16 %v52
    %v101 = vunpack.c.l.b16 %v53
    %v102 = vunpack.c.l.b16 %v54
    %v103 = vunpack.c.l.b16 %v55
    %v104 = vunpack.c.l.b16 %v56
    %v105 = vunpack.c.l.b16 %v57
    %v106 = vunpack.c.l.b16 %v58
    %v107 = vunpack.c.l.b16 %v59
    %v108 = vpack.c.b16 %v93, %v92
    %v109 = vpack.c.b16 %v95, %v94
    %v110 = vpack.c.b16 %v97, %v96
    %v111 = vpack.c.b16 %v99, %v98
    %v112 = vpack.c.b16 %v101, %v100
    %v113 = vpack.c.b16 %v103, %v102
    %v114 = vpack.c.b16 %v105, %v104
    %v115 = vpack.c.b16 %v107, %v106
    %v140 = vunpack.c.l.b16 %v60
    %v141 = vunpack.c.h.b16 %v60
    %v142 = vunpack.c.l.b16 %v61
    %v143 = vunpack.c.h.b16 %v61
    %v144 = vunpack.c.l.b16 %v62
    %v145 = vunpack.c.h.b16 %v62
    %v146 = vunpack.c.l.b16 %v63
    %v147 = vunpack.c.h.b16 %v63
    %v148 = vunpack.c.l.b16 %v64
    %v149 = vunpack.c.h.b16 %v64
    %v150 = vunpack.c.l.b16 %v65
    %v151 = vunpack.c.h.b16 %v65
    %v152 = vunpack.c.l.b16 %v66
    %v153 = vunpack.c.h.b16 %v66
    %v154 = vunpack.c.l.b16 %v67
    %v155 = vunpack.c.h.b16 %v67
    %v156 = vunpack.c.l.b16 %v68
    %v157 = vunpack.c.h.b16 %v68
    %v158 = vunpack.c.l.b16 %v69
    %v159 = vunpack.c.h.b16 %v69
    %v160 = vunpack.c.l.b16 %v70
    %v161 = vunpack.c.h.b16 %v70
    %v162 = vunpack.c.l.b16 %v71
    %v163 = vunpack.c.h.b16 %v71
    %v164 = vunpack.c.l.b16 %v72
    %v165 = vunpack.c.h.b16 %v72
    %v166 = vunpack.c.l.b16 %v73
    %v167 = vunpack.c.h.b16 %v73
    %v168 = vunpack.c.l.b16 %v74
    %v169 = vunpack.c.h.b16 %v74
    %v170 = vunpack.c.l.b16 %v75
    %v171 = vunpack.c.h.b16 %v75
    %v172 = vpack.c.b16 %v142, %v140
    %v173 = vpack.c.b16 %v143, %v141
    %v174 = vpack.c.b16 %v146, %v144
    %v175 = vpack.c.b16 %v147, %v145
    %v176 = vpack.c.b16 %v150, %v148
    %v177 = vpack.c.b16 %v151, %v149
    %v178 = vpack.c.b16 %v154, %v152
    %v179 = vpack.c.b16 %v155, %v153
    %v180 = vpack.c.b16 %v158, %v156
    %v181 = vpack.c.b16 %v159, %v157
    %v182 = vpack.c.b16 %v162, %v160
    %v183 = vpack.c.b16 %v163, %v161
    %v184 = vpack.c.b16 %v166, %v164
    %v185 = vpack.c.b16 %v167, %v165
    %v186 = vpack.c.b16 %v170, %v168
    %v187 = vpack.c.b16 %v171, %v169
    %204 = vmatprep.subr.bf16.mxu0 %v173
    %205 = vmatpush1.bf16.msra.mxu0 %v172
    %206 = vmatprep.subr.bf16.mxu0 %v175
    %207 = vmatpush1.bf16.msra.mxu0 %v174
    %208 = vmatprep.subr.bf16.mxu0 %v177
    %209 = vmatpush1.bf16.msra.mxu0 %v176
    %210 = vmatprep.subr.bf16.mxu0 %v179
    %211 = vmatpush1.bf16.msra.mxu0 %v178
    %212 = vmatprep.subr.bf16.mxu0 %v181
    %213 = vmatpush1.bf16.msra.mxu0 %v180
    %214 = vmatprep.subr.bf16.mxu0 %v183
    %215 = vmatpush1.bf16.msra.mxu0 %v182
    %216 = vmatprep.subr.bf16.mxu0 %v185
    %217 = vmatpush1.bf16.msra.mxu0 %v184
    %218 = vmatprep.subr.bf16.mxu0 %v187
    %219 = vmatpush1.bf16.msra.mxu0 %v186
    %220 = vmatprep.subr.bf16.mxu0 0
    %221 = vmatpush1.bf16.msra.mxu0 0
    %222 = vmatprep.subr.bf16.mxu0 0
    %223 = vmatpush1.bf16.msra.mxu0 0
    %224 = vmatprep.subr.bf16.mxu0 0
    %225 = vmatpush1.bf16.msra.mxu0 0
    %226 = vmatprep.subr.bf16.mxu0 0
    %227 = vmatpush1.bf16.msra.mxu0 0
    %228 = vmatprep.subr.bf16.mxu0 0
    %229 = vmatpush1.bf16.msra.mxu0 0
    %230 = vmatprep.subr.bf16.mxu0 0
    %231 = vmatpush1.bf16.msra.mxu0 0
    %232 = vmatprep.subr.bf16.mxu0 0
    %233 = vmatpush1.bf16.msra.mxu0 0
    %234 = vmatprep.subr.bf16.mxu0 0
    %235 = vmatpush1.bf16.msra.mxu0 0
    %236 = vmatprep.mubr.bf16.mxu0 0
    %237 = vmatmul.mubr.bf16.gmra.mrb[0].mxu0 %v108
    %v238 = vpop.f32.mrb[0].mxu0
    %v239 = vadd.f32 0.0, %v238
    %v240 = vpop.f32.mrb[0].mxu0
    %v241 = vadd.f32 0.0, %v240
    %v242 = vpop.f32.mrb[0].mxu0
    %v243 = vadd.f32 0.0, %v242
    %v244 = vpop.f32.mrb[0].mxu0
    %v245 = vadd.f32 0.0, %v244
    %246 = vmatprep.mubr.bf16.mxu0 0
    %247 = vmatmul.mubr.bf16.gmra.mrb[0].mxu0 %v109
    %v248 = vpop.f32.mrb[0].mxu0
    %v249 = vadd.f32 0.0, %v248
    %v250 = vpop.f32.mrb[0].mxu0
    %v251 = vadd.f32 0.0, %v250
    %v252 = vpop.f32.mrb[0].mxu0
    %v253 = vadd.f32 0.0, %v252
    %v254 = vpop.f32.mrb[0].mxu0
    %v255 = vadd.f32 0.0, %v254
    %256 = vmatprep.mubr.bf16.mxu0 0
    %257 = vmatmul.mubr.bf16.gmra.mrb[0].mxu0 %v110
    %v258 = vpop.f32.mrb[0].mxu0
    %v259 = vadd.f32 0.0, %v258
    %v260 = vpop.f32.mrb[0].mxu0
    %v261 = vadd.f32 0.0, %v260
    %v262 = vpop.f32.mrb[0].mxu0
    %v263 = vadd.f32 0.0, %v262
    %v264 = vpop.f32.mrb[0].mxu0
    %v265 = vadd.f32 0.0, %v264
    %266 = vmatprep.mubr.bf16.mxu0 0
    %267 = vmatmul.mubr.bf16.gmra.mrb[0].mxu0 %v111
    %v268 = vpop.f32.mrb[0].mxu0
    %v269 = vadd.f32 0.0, %v268
    %v270 = vpop.f32.mrb[0].mxu0
    %v271 = vadd.f32 0.0, %v270
    %v272 = vpop.f32.mrb[0].mxu0
    %v273 = vadd.f32 0.0, %v272
    %v274 = vpop.f32.mrb[0].mxu0
    %v275 = vadd.f32 0.0, %v274
    %276 = vmatprep.mubr.bf16.mxu0 0
    %277 = vmatmul.mubr.bf16.gmra.mrb[0].mxu0 %v112
    %v278 = vpop.f32.mrb[0].mxu0
    %v279 = vadd.f32 0.0, %v278
    %v280 = vpop.f32.mrb[0].mxu0
    %v281 = vadd.f32 0.0, %v280
    %v282 = vpop.f32.mrb[0].mxu0
    %v283 = vadd.f32 0.0, %v282
    %v284 = vpop.f32.mrb[0].mxu0
    %v285 = vadd.f32 0.0, %v284
    %286 = vmatprep.mubr.bf16.mxu0 0
    %287 = vmatmul.mubr.bf16.gmra.mrb[0].mxu0 %v113
    %v288 = vpop.f32.mrb[0].mxu0
    %v289 = vadd.f32 0.0, %v288
    %v290 = vpop.f32.mrb[0].mxu0
    %v291 = vadd.f32 0.0, %v290
    %v292 = vpop.f32.mrb[0].mxu0
    %v293 = vadd.f32 0.0, %v292
    %v294 = vpop.f32.mrb[0].mxu0
    %v295 = vadd.f32 0.0, %v294
    %296 = vmatprep.mubr.bf16.mxu0 0
    %297 = vmatmul.mubr.bf16.gmra.mrb[0].mxu0 %v114
    %v298 = vpop.f32.mrb[0].mxu0
    %v299 = vadd.f32 0.0, %v298
    %v300 = vpop.f32.mrb[0].mxu0
    %v301 = vadd.f32 0.0, %v300
    %v302 = vpop.f32.mrb[0].mxu0
    %v303 = vadd.f32 0.0, %v302
    %v304 = vpop.f32.mrb[0].mxu0
    %v305 = vadd.f32 0.0, %v304
    %306 = vmatprep.mubr.bf16.mxu0 0
    %307 = vmatmul.mubr.bf16.gmra.mrb[0].mxu0 %v115
    %v308 = vpop.f32.mrb[0].mxu0
    %v309 = vadd.f32 0.0, %v308
    %v310 = vpop.f32.mrb[0].mxu0
    %v311 = vadd.f32 0.0, %v310
    %v312 = vpop.f32.mrb[0].mxu0
    %v313 = vadd.f32 0.0, %v312
    %v314 = vpop.f32.mrb[0].mxu0
    %v315 = vadd.f32 0.0, %v314
    %316 = vdwg.mxu0
    %v317 = vpack.c.bf16 %v243, %v239
    %v318 = vpack.c.bf16 %v253, %v249
    %v319 = vpack.c.bf16 %v263, %v259
    %v320 = vpack.c.bf16 %v273, %v269
    %v321 = vpack.c.bf16 %v283, %v279
    %v322 = vpack.c.bf16 %v293, %v289
    %v323 = vpack.c.bf16 %v303, %v299
    %v324 = vpack.c.bf16 %v313, %v309
    %v333 = vunpack.c.l.b16 %v317
    %v334 = vunpack.c.h.b16 %v317
    %v335 = vunpack.c.l.b16 %v318
    %v336 = vunpack.c.h.b16 %v318
    %v337 = vunpack.c.l.b16 %v319
    %v338 = vunpack.c.h.b16 %v319
    %v339 = vunpack.c.l.b16 %v320
    %v340 = vunpack.c.h.b16 %v320
    %v341 = vunpack.c.l.b16 %v321
    %v342 = vunpack.c.h.b16 %v321
    %v343 = vunpack.c.l.b16 %v322
    %v344 = vunpack.c.h.b16 %v322
    %v345 = vunpack.c.l.b16 %v323
    %v346 = vunpack.c.h.b16 %v323
    %v347 = vunpack.c.l.b16 %v324
    %v348 = vunpack.c.h.b16 %v324
    %v349 = vpack.c.b16 %v333, %v333
    %v350 = vpack.c.b16 %v334, %v334
    %v351 = vpack.c.b16 %v335, %v335
    %v352 = vpack.c.b16 %v336, %v336
    %v353 = vpack.c.b16 %v337, %v337
    %v354 = vpack.c.b16 %v338, %v338
    %v355 = vpack.c.b16 %v339, %v339
    %v356 = vpack.c.b16 %v340, %v340
    %v357 = vpack.c.b16 %v341, %v341
    %v358 = vpack.c.b16 %v342, %v342
    %v359 = vpack.c.b16 %v343, %v343
    %v360 = vpack.c.b16 %v344, %v344
    %v361 = vpack.c.b16 %v345, %v345
    %v362 = vpack.c.b16 %v346, %v346
    %v363 = vpack.c.b16 %v347, %v347
    %v364 = vpack.c.b16 %v348, %v348
    %381 = vst [vmem:[#allocation7] sm:$0xf] %v349
    %382 = vst [vmem:[#allocation7 + $0x4] sm:$0xf] %v350
    %383 = vst [vmem:[#allocation7 + $0x8] sm:$0xf] %v351
    %384 = vst [vmem:[#allocation7 + $0xc] sm:$0xf] %v352
    %385 = vst [vmem:[#allocation7 + $0x10] sm:$0xf] %v353
    %386 = vst [vmem:[#allocation7 + $0x14] sm:$0xf] %v354
    %387 = vst [vmem:[#allocation7 + $0x18] sm:$0xf] %v355
    %388 = vst [vmem:[#allocation7 + $0x1c] sm:$0xf] %v356
    %389 = vst [vmem:[#allocation7 + $0x20] sm:$0xf] %v357
    %390 = vst [vmem:[#allocation7 + $0x24] sm:$0xf] %v358
    %391 = vst [vmem:[#allocation7 + $0x28] sm:$0xf] %v359
    %392 = vst [vmem:[#allocation7 + $0x2c] sm:$0xf] %v360
    %393 = vst [vmem:[#allocation7 + $0x30] sm:$0xf] %v361
    %394 = vst [vmem:[#allocation7 + $0x34] sm:$0xf] %v362
    %395 = vst [vmem:[#allocation7 + $0x38] sm:$0xf] %v363
    %396 = vst [vmem:[#allocation7 + $0x3c] sm:$0xf] %v364
    %397 = vst [vmem:[#allocation8] sm:$0xff] %v241
    %398 = vst [vmem:[#allocation8 + $0x8] sm:$0xff] %v245
    %399 = vst [vmem:[#allocation8 + $0x10] sm:$0xff] %v251
    %400 = vst [vmem:[#allocation8 + $0x18] sm:$0xff] %v255
    %401 = vst [vmem:[#allocation8 + $0x20] sm:$0xff] %v261
    %402 = vst [vmem:[#allocation8 + $0x28] sm:$0xff] %v265
    %403 = vst [vmem:[#allocation8 + $0x30] sm:$0xff] %v271
    %404 = vst [vmem:[#allocation8 + $0x38] sm:$0xff] %v275
    %405 = vst [vmem:[#allocation8 + $0x40] sm:$0xff] %v281
    %406 = vst [vmem:[#allocation8 + $0x48] sm:$0xff] %v285
    %407 = vst [vmem:[#allocation8 + $0x50] sm:$0xff] %v291
    %408 = vst [vmem:[#allocation8 + $0x58] sm:$0xff] %v295
    %409 = vst [vmem:[#allocation8 + $0x60] sm:$0xff] %v301
    %410 = vst [vmem:[#allocation8 + $0x68] sm:$0xff] %v305
    %411 = vst [vmem:[#allocation8 + $0x70] sm:$0xff] %v311
    %412 = vst [vmem:[#allocation8 + $0x78] sm:$0xff] %v315
    // Predicated region
    $region18: #{tpu_custom_call.1} parent=1 // pred_check
      _
    $region19: #{tpu_custom_call.1} parent=1 // pred_check_branch
      %414 = sbr.rel (0) target = $region21
    $region20: #{tpu_custom_call.1} parent=1 // pred_region
      %s416 = ssub.s32 1024, 1024
      %417 = vsyncadd [#allocation4], %s416
      %s418 = sshll.u32 [#allocation7], 4
      %s419 = int_to_ptr.vmem [resolvable:$true] %s418
      %424 = dma.vmem_to_hbm [thread:$0]  %s419, 1024, %s2, [#allocation4], 64, 64, 4
    $region21: #{tpu_custom_call.1} parent=1 // pred_fallthru
      _
    // Predicated region
    $region22: #{tpu_custom_call.1} parent=1 // pred_check
      _
    $region23: #{tpu_custom_call.1} parent=1 // pred_check_branch
      %426 = sbr.rel (0) target = $region25
    $region24: #{tpu_custom_call.1} parent=1 // pred_region
      %s428 = ssub.s32 2048, 2048
      %429 = vsyncadd [#allocation9], %s428
      %s430 = sshll.u32 [#allocation8], 4
      %s431 = int_to_ptr.vmem [resolvable:$true] %s430
      %436 = dma.vmem_to_hbm [thread:$0]  %s431, 2048, %s3, [#allocation9], 128, 128, 8
    $region25: #{tpu_custom_call.1} parent=1 // pred_fallthru
      _
    // Predicated region
    $region26: #{tpu_custom_call.1} parent=1 // pred_check
      _
    $region27: #{tpu_custom_call.1} parent=1 // pred_check_branch
      %438 = sbr.rel (0) target = $region29
    $region28: #{tpu_custom_call.1} parent=1 // pred_region
      %439 = dma.done [#allocation4], 1024
    $region29: #{tpu_custom_call.1} parent=1 // pred_fallthru
      _
    // Predicated region
    $region30: #{tpu_custom_call.1} parent=1 // pred_check
      _
    $region31: #{tpu_custom_call.1} parent=1 // pred_check_branch
      %441 = sbr.rel (0) target = $region33
    $region32: #{tpu_custom_call.1} parent=1 // pred_region
      %442 = dma.done [#allocation9], 2048
    $region33: #{tpu_custom_call.1} parent=1 // pred_fallthru
      _
    %443 = vsyncpa [#allocation3], 1
    %444 = vsyncpa [#allocation6], 1
    %445 = vsyncpa [#allocation4], 1
    %446 = vsyncpa [#allocation9], 1

</llo_original>
